<compile_context>
chip_gen: v7x
topology: tpu7x:2x2x1
jax: 0.10.0
libtpu: 0.0.40
codegen_flags: <defaults>
</compile_context>

<pallas_src>
import numpy as np
import jax
import jax.numpy as jnp
from jax.experimental import pallas as pl
from jax.experimental.pallas import tpu as pltpu

_LANE = 128


def _round_up(x, m):
    return ((x + m - 1) // m) * m


def _make_slab_kernel(slab_col_starts, slab_widths):
    """Kernel that fills the lane-dense (8, total_cols) point table.

    slab_col_starts / slab_widths are Python ints (multiples of 128); each
    slab is one fused `iota * mul + add` over an aligned (8, width) range
    followed by one unmasked store.  mul/add arrive as (8, n_slabs) inputs.
    """
    max_cols = max(slab_widths)

    def kernel(mul_ref, add_ref, out_ref):
        # Hoisted once: JAX does not CSE broadcast_in_dim.
        j_full = jax.lax.broadcasted_iota(jnp.int32, (1, max_cols), 1)
        j_full = j_full.astype(jnp.float32)
        for s, (cs, w) in enumerate(zip(slab_col_starts, slab_widths)):
            mul = mul_ref[:, s:s + 1]            # (8, 1) per-slab params (input, not
            add = add_ref[:, s:s + 1]            #  a captured constant)
            vals = j_full[:, :w] * mul + add     # (8, w); inf stays additive
            out_ref[:, cs:cs + w] = vals         # aligned, unmasked store

    return kernel


class PointGenerator:
    """JAX/Pallas port of the PyTorch PointGenerator (same forward semantics)."""

    def __init__(self, strides, buffer_size, offset=False):
        reg_range, last = [], 0
        for stride in strides[1:]:
            reg_range.append((last, stride))
            last = stride
        reg_range.append((last, float("inf")))
        self.strides = list(strides)
        self.reg_range = reg_range
        self.buffer_size = buffer_size
        self.offset = offset
        # rows cached per level == len(torch.arange(0, buffer_size, stride))
        self.buffer_rows = [len(np.arange(0, buffer_size, s)) for s in strides]
        n_levels = len(self.strides)

        # --- slab layout: pack two levels per 128-aligned column slab -------
        # Pair levels largest-rows-first so each slab's width is set by the
        # bigger member; partner rides the otherwise-unused sublanes 4..7.
        order = sorted(range(n_levels), key=lambda i: -self.buffer_rows[i])
        self._level_place = [None] * n_levels     # level -> (slab_idx, sublane_off)
        self._slab_col_starts, self._slab_widths = [], []
        col = 0
        for k in range(0, n_levels, 2):
            members = order[k:k + 2]
            width = _round_up(max(self.buffer_rows[i] for i in members), _LANE)
            slab_idx = len(self._slab_col_starts)
            self._slab_col_starts.append(col)
            self._slab_widths.append(width)
            for j, lvl in enumerate(members):
                self._level_place[lvl] = (slab_idx, 4 * j)
            col += width
        self._total_cols = col
        n_slabs = len(self._slab_widths)

        # --- per-slab mul/add parameter tables (kernel inputs) --------------
        mul_all = np.zeros((8, n_slabs), np.float32)
        add_all = np.zeros((8, n_slabs), np.float32)
        for lvl, (slab_idx, so) in enumerate(self._level_place):
            s = float(self.strides[lvl])
            lo, hi = self.reg_range[lvl]
            off = 0.5 * s if offset else 0.0
            mul_all[so + 0, slab_idx] = s        # sublane so+0: point = j*stride + off
            add_all[so + 0, slab_idx] = off
            add_all[so + 1, slab_idx] = float(lo)   # so+1: reg_low
            add_all[so + 2, slab_idx] = float(hi)   # so+2: reg_high (+inf, additive only)
            add_all[so + 3, slab_idx] = s            # so+3: stride
        self._mul_all = jnp.asarray(mul_all)
        self._add_all = jnp.asarray(add_all)

        self._buffers = None        # lazily built; Pallas kernel compiled once
        self._forward_cache = {}    # sizes tuple -> jitted slice+concat

    # ------------------------------------------------------------------ build
    def _build_buffers(self):
        kernel = _make_slab_kernel(self._slab_col_starts, self._slab_widths)

        table_bytes = 8 * self._total_cols * 4
        cparams = None
        if table_bytes > (12 << 20):
            # Guard against small default scoped-VMEM budgets (v5e 16 MiB,
            # v7x 32 MiB default / 64 MiB physical).
            cparams = pltpu.CompilerParams(
                vmem_limit_bytes=min(table_bytes + (2 << 20), 64 << 20))

        table = pl.pallas_call(
            kernel,
            out_shape=jax.ShapeDtypeStruct((8, self._total_cols), jnp.float32),
            in_specs=[pl.BlockSpec(memory_space=pltpu.MemorySpace.VMEM),
                      pl.BlockSpec(memory_space=pltpu.MemorySpace.VMEM)],
            out_specs=pl.BlockSpec(memory_space=pltpu.MemorySpace.VMEM),
            compiler_params=cparams,
        )(self._mul_all, self._add_all)

        # Keep the cached per-level buffers lane-dense: (4, rows).
        buffers = []
        for (slab_idx, so), rows in zip(self._level_place, self.buffer_rows):
            cs = self._slab_col_starts[slab_idx]
            buffers.append(table[so:so + 4, cs:cs + rows])
        return tuple(buffers)

    # ---------------------------------------------------------------- forward
    def forward(self, pymid):
        if self._buffers is None:   # first call: run + compile Pallas kernel once
            self._buffers = self._build_buffers()
        n_levels = len(self.strides)
        # (matches torch: extra pyramid levels beyond len(strides) are dropped)
        sizes = [int(p.shape[1]) for p in pymid] + [0] * (n_levels - len(pymid))
        sizes = tuple(sizes[:n_levels])
        for size, rows in zip(sizes, self.buffer_rows):
            assert size <= rows, "reached max buffer size"

        fn = self._forward_cache.get(sizes)
        if fn is None:
            def slice_concat(bufs, _sizes=sizes):
                # lane-dense slices + lane-axis concat; single transpose at end
                chunks = [b[:, :s] for s, b in zip(_sizes, bufs) if s > 0]
                return jnp.transpose(jnp.concatenate(chunks, axis=1), (1, 0))
            fn = jax.jit(slice_concat)
            self._forward_cache[sizes] = fn
        return fn(self._buffers)

    # --------------------------------------------------------------- reference
    def reference(self, pymid):
        """Pure-numpy mirror of the torch module (for verification)."""
        n_levels = len(self.strides)
        sizes = [int(p.shape[1]) for p in pymid] + [0] * (n_levels - len(pymid))
        sizes = sizes[:n_levels]
        chunks = []
        for size, stride, (lo, hi) in zip(sizes, self.strides, self.reg_range):
            if size == 0:
                continue
            pts = np.arange(0, self.buffer_size, stride, dtype=np.float32)[:, None]
            if self.offset:
                pts = pts + 0.5 * stride
            assert size <= pts.shape[0], "reached max buffer size"
            rr = np.tile(np.array([[lo, hi]], np.float32), (pts.shape[0], 1))
            sv = np.tile(np.array([[stride]], np.float32), (pts.shape[0], 1))
            chunks.append(np.concatenate((pts, rr, sv), axis=1)[:size])
        return np.concatenate(chunks, axis=0)


if __name__ == "__main__":
    key = jax.random.PRNGKey(0)

    # --- config 1: 3 pyramid levels (odd count), strides 1/2/4, offset=True
    strides = [1, 2, 4]
    buffer_size = 16
    gen = PointGenerator(strides, buffer_size, offset=True)

    # pymid: list of (B, T_i, C) feature maps; only T_i (shape) matters
    B, C = 2, 32
    k1, k2, k3 = jax.random.split(key, 3)
    pymid = [
        jax.random.normal(k1, (B, 16, C), jnp.float32),
        jax.random.normal(k2, (B, 8, C), jnp.float32),
        jax.random.normal(k3, (B, 4, C), jnp.float32),
    ]

    out = jax.block_until_ready(gen.forward(pymid))
    ref = gen.reference(pymid)
    np.testing.assert_allclose(np.asarray(out), ref, rtol=1e-6, atol=1e-6)

    # second call with a different pyramid: cached table + cached jit, no rebuild
    pymid2 = [pymid[0][:, :10], pymid[1][:, :3]]
    out2 = jax.block_until_ready(gen.forward(pymid2))
    ref2 = gen.reference(pymid2)
    np.testing.assert_allclose(np.asarray(out2), ref2, rtol=1e-6, atol=1e-6)

    # --- config 2: even level count, offset=False (exercises full slab packing)
    gen2 = PointGenerator([2, 4], 32, offset=False)
    pymidB = [
        jax.random.normal(k1, (B, 16, C), jnp.float32),
        jax.random.normal(k2, (B, 7, C), jnp.float32),
    ]
    out3 = jax.block_until_ready(gen2.forward(pymidB))
    ref3 = gen2.reference(pymidB)
    np.testing.assert_allclose(np.asarray(out3), ref3, rtol=1e-6, atol=1e-6)

    print("KERNEL_OK")
</pallas_src>

<mosaic_0001>
module attributes {stable_mosaic.version = 11 : i64} {
  func.func @kernel(%arg0: memref<8x2xf32, #tpu.memory_space<vmem>>, %arg1: memref<8x2xf32, #tpu.memory_space<vmem>>, %arg2: memref<8x256xf32, #tpu.memory_space<vmem>>) attributes {dimension_semantics = [], scalar_prefetch = 0 : i64, scratch_operands = 0 : i64, tpu.core_type = #tpu.core_type<tc>} {
    %0 = tpu.iota {dimensions = array<i32: 1>} : vector<1x128xi32>
    %1 = arith.sitofp %0 : vector<1x128xi32> to vector<1x128xf32>
    %c0 = arith.constant 0 : index
    %c0_0 = arith.constant 0 : index
    %2 = vector.load %arg0[%c0, %c0_0] : memref<8x2xf32, #tpu.memory_space<vmem>>, vector<8x1xf32>
    %c0_1 = arith.constant 0 : index
    %c0_2 = arith.constant 0 : index
    %3 = vector.load %arg1[%c0_1, %c0_2] : memref<8x2xf32, #tpu.memory_space<vmem>>, vector<8x1xf32>
    %4 = vector.broadcast %1 : vector<1x128xf32> to vector<8x128xf32>
    %5 = vector.broadcast %2 : vector<8x1xf32> to vector<8x128xf32>
    %6 = arith.mulf %4, %5 : vector<8x128xf32>
    %7 = vector.broadcast %3 : vector<8x1xf32> to vector<8x128xf32>
    %8 = arith.addf %6, %7 : vector<8x128xf32>
    %c0_3 = arith.constant 0 : index
    %c0_4 = arith.constant 0 : index
    %9 = vector.load %arg2[%c0_3, %c0_4] : memref<8x256xf32, #tpu.memory_space<vmem>>, vector<8x128xf32>
    tpu.vector_store %arg2[%c0_3, %c0_4], %8 {strides = array<i32>} : memref<8x256xf32, #tpu.memory_space<vmem>>, vector<8x128xf32>,
    %c0_5 = arith.constant 0 : index
    %c1 = arith.constant 1 : index
    %10 = vector.load %arg0[%c0_5, %c1] : memref<8x2xf32, #tpu.memory_space<vmem>>, vector<8x1xf32>
    %c0_6 = arith.constant 0 : index
    %c1_7 = arith.constant 1 : index
    %11 = vector.load %arg1[%c0_6, %c1_7] : memref<8x2xf32, #tpu.memory_space<vmem>>, vector<8x1xf32>
    %12 = vector.broadcast %1 : vector<1x128xf32> to vector<8x128xf32>
    %13 = vector.broadcast %10 : vector<8x1xf32> to vector<8x128xf32>
    %14 = arith.mulf %12, %13 : vector<8x128xf32>
    %15 = vector.broadcast %11 : vector<8x1xf32> to vector<8x128xf32>
    %16 = arith.addf %14, %15 : vector<8x128xf32>
    %c0_8 = arith.constant 0 : index
    %c128 = arith.constant 128 : index
    %17 = vector.load %arg2[%c0_8, %c128] : memref<8x256xf32, #tpu.memory_space<vmem>>, vector<8x128xf32>
    tpu.vector_store %arg2[%c0_8, %c128], %16 {strides = array<i32>} : memref<8x256xf32, #tpu.memory_space<vmem>>, vector<8x128xf32>,
    return
  }
}

</mosaic_0001>

<llo_original>
// kernel: tpu_custom_call.1
$region0: #{tpu_custom_call.1}
  #allocation0 [shape = 'u32[]', space=smem, size = 0x4, offset = 0x4, fixed_abs, tag = 'smem constant byte address 0x4 - core index']
  #allocation1 [shape = 'u32[144,128]{1,0:T(1,128)}', space=vmem, size = 0x12000, scoped, tag = 'internal scratch']
  %s0 = inlined_call_operand.vmem [shape: f32[8,2], index: 0, kind: input, shape index: {}]
  %s1 = inlined_call_operand.vmem [shape: f32[8,2], index: 1, kind: input, shape index: {}]
  %s2 = inlined_call_operand.hbm [shape: f32[8,256], index: 2, kind: output, shape index: {}]
  %s3 = sld [smem:[#allocation0]]
  $region18: #{tpu_custom_call.1} parent=0
    _
  %s5 = ssub.s32 1, %s3
  %s6 = scalar_select 0, %s5, %s3
  $region1: #{tpu_custom_call.1} parent=0
    #allocation2 [shape = 'u8[8192]{0}', space=vmem, size = 0x2000, scoped, tag = 'output window, operand 0, single buffered']
    #allocation3 [shape = 's32[1]{0}', space=sflag, size = 0x4, scoped, tag = 'scoped memory for tpu_custom_call.1']
    %7 = vsyncpa [#allocation3], 0
    // Predicated region
    $region2: #{tpu_custom_call.1} parent=1 // pred_check
      _
    $region3: #{tpu_custom_call.1} parent=1 // pred_check_branch
      %9 = sbr.rel (0) target = $region5
    $region4: #{tpu_custom_call.1} parent=1 // pred_region
      _
    $region5: #{tpu_custom_call.1} parent=1 // pred_fallthru
      _
    // Predicated region
    $region6: #{tpu_custom_call.1} parent=1 // pred_check
      _
    $region7: #{tpu_custom_call.1} parent=1 // pred_check_branch
      %11 = sbr.rel (0) target = $region9
    $region8: #{tpu_custom_call.1} parent=1 // pred_region
      _
    $region9: #{tpu_custom_call.1} parent=1 // pred_fallthru
      _
    %v12 = vlaneseq
    %v13 = vand.u32 %v12, 127
    %v14 = vcvt.s32.f32 %v13
    %v15 = vld [vmem:[%s0] sm:$0xff]
    %v16 = vld [vmem:[%s1] sm:$0xff]
    %18 = vset.pattern.permute.xlu0 0
    %19 = vperm.xlu0 %18, %v15
    %v20 = vpop.permute.xlu0 %19
    %v22 = vmul.f32 %v14, %v20
    %24 = vset.pattern.permute.xlu0 0
    %25 = vperm.xlu0 %24, %v16
    %v26 = vpop.permute.xlu0 %25
    %v28 = vadd.f32 %v22, %v26
    %29 = vst [vmem:[#allocation2] sm:$0xff] %v28
    %v30 = vld [vmem:[%s0] sm:$0xff]
    %v31 = vld [vmem:[%s1] sm:$0xff]
    %33 = vset.pattern.permute.xlu0 1
    %34 = vperm.xlu0 %33, %v30
    %v35 = vpop.permute.xlu0 %34
    %v37 = vmul.f32 %v14, %v35
    %39 = vset.pattern.permute.xlu0 1
    %40 = vperm.xlu0 %39, %v31
    %v41 = vpop.permute.xlu0 %40
    %v43 = vadd.f32 %v37, %v41
    %44 = vst [vmem:[#allocation2 + $0x8] sm:$0xff] %v43
    // Predicated region
    $region10: #{tpu_custom_call.1} parent=1 // pred_check
      _
    $region11: #{tpu_custom_call.1} parent=1 // pred_check_branch
      %46 = sbr.rel (0) target = $region13
    $region12: #{tpu_custom_call.1} parent=1 // pred_region
      %s48 = ssub.s32 256, 256
      %49 = vsyncadd [#allocation3], %s48
      %s51 = sshll.u32 [#allocation2], 4
      %s52 = int_to_ptr.vmem [resolvable:$true] %s51
      %54 = dma.vmem_to_hbm [thread:$0]  %s52, 256, %s2, [#allocation3]
    $region13: #{tpu_custom_call.1} parent=1 // pred_fallthru
      _
    // Predicated region
    $region14: #{tpu_custom_call.1} parent=1 // pred_check
      _
    $region15: #{tpu_custom_call.1} parent=1 // pred_check_branch
      %56 = sbr.rel (0) target = $region17
    $region16: #{tpu_custom_call.1} parent=1 // pred_region
      %57 = dma.done [#allocation3], 256
    $region17: #{tpu_custom_call.1} parent=1 // pred_fallthru
      _
    %58 = vsyncpa [#allocation3], 1

</llo_original>
